<compile_context>
chip_gen: v7x
topology: tpu7x:2x2x1
jax: 0.10.0
libtpu: 0.0.40
codegen_flags: <defaults>
</compile_context>

<pallas_src>
import functools

import jax
import jax.numpy as jnp
from jax import lax
from jax.experimental import pallas as pl
from jax.experimental.pallas import tpu as pltpu


# ---------------------------------------------------------------------------
# Shared LayerNorm epilogue (TF-style: epsilon inside the sqrt, biased variance)
# ---------------------------------------------------------------------------
def _layernorm(y, gamma, beta, eps):
    u = jnp.mean(y, axis=-1, keepdims=True)
    d = y - u
    s = jnp.mean(d * d, axis=-1, keepdims=True)
    return gamma * (d * lax.rsqrt(s + eps)) + beta        # rsqrt -> EUP slot


# ---------------------------------------------------------------------------
# Kernel 1: resident weight (W stays in VMEM across all row tiles)
# ---------------------------------------------------------------------------
def _gat_self_output_kernel(x_ref, w_ref, b_ref, r_ref, g_ref, be_ref, o_ref, *, eps):
    """x_ref (TN, D) row tile; w_ref (D, D) resident; b/g/be (1, D); o_ref (TN, D)."""
    w = w_ref[...]                                         # already bf16 (or f32)
    x = x_ref[...].astype(w.dtype)                         # bf16 MXU inputs, f32 acc
    y = jnp.dot(x, w, preferred_element_type=jnp.float32)  # MXU
    y = y + b_ref[...] + r_ref[...]                        # bias + residual (f32 VPU)
    o_ref[...] = _layernorm(y, g_ref[...], be_ref[...], eps).astype(o_ref.dtype)


# ---------------------------------------------------------------------------
# Kernel 2: K-tiled weight (for hidden sizes whose weight won't fit VMEM, v7x)
# ---------------------------------------------------------------------------
def _gat_self_output_ktiled_kernel(x_ref, w_ref, b_ref, r_ref, g_ref, be_ref,
                                   o_ref, acc_ref, *, eps):
    """Grid (rows, K/tk). x_ref (TN, tk); w_ref (tk, D); acc_ref (TN, D) f32 scratch."""
    k = pl.program_id(1)

    @pl.when(k == 0)
    def _():
        acc_ref[...] = jnp.zeros_like(acc_ref)

    w = w_ref[...]
    x = x_ref[...].astype(w.dtype)
    acc_ref[...] += jnp.dot(x, w, preferred_element_type=jnp.float32)

    @pl.when(k == pl.num_programs(1) - 1)
    def _():
        y = acc_ref[...] + b_ref[...] + r_ref[...]
        o_ref[...] = _layernorm(y, g_ref[...], be_ref[...], eps).astype(o_ref.dtype)


# ---------------------------------------------------------------------------
# Wrapper
# ---------------------------------------------------------------------------
def gat_self_output(hidden_states, input_tensor, w, b, gamma, beta, *,
                    eps=1e-12, block_rows=512, block_k=None,
                    use_bf16=True, out_dtype=jnp.float32,
                    vmem_limit_bytes=None):
    """GATSelfOutput forward (eval mode).

    hidden_states, input_tensor : (B, S, D) float32
    w                           : (D, D) stored as (in_features, out_features) == nn.Linear.weight.T
    b, gamma, beta              : (D,)
    """
    B, S, D = hidden_states.shape
    N = B * S
    x = hidden_states.reshape(N, D)
    r = input_tensor.reshape(N, D)
    b2 = b.reshape(1, D).astype(jnp.float32)
    g2 = gamma.reshape(1, D).astype(jnp.float32)
    be2 = beta.reshape(1, D).astype(jnp.float32)

    # Convert W once, outside the grid loop (proxy for keeping a persistent bf16
    # copy in the parameter pytree).  The kernel never re-casts it.
    w_mat = w.astype(jnp.bfloat16) if use_bf16 else w.astype(jnp.float32)
    w_bytes = 2 if use_bf16 else 4
    out_bytes = jnp.dtype(out_dtype).itemsize

    # Row tile: multiple of 8 sublanes; ragged tail handled by cdiv + masked stores.
    tn = min(int(block_rows), N)
    tn = max(8, (tn // 8) * 8)
    n_row_blocks = pl.cdiv(N, tn)

    # K-tile the contraction when a (double-buffered) resident W would be too big
    # for VMEM (matters on v7x's 64 MiB).  tk must be a multiple of 128 that
    # divides D so no padded-K garbage leaks into the accumulator.
    if block_k is None and 2 * D * D * w_bytes > (24 << 20):
        block_k = 512
    tk = None
    if block_k is not None and D > 128:
        t = min(int(block_k), D)
        t = (t // 128) * 128
        while t >= 128 and D % t != 0:
            t -= 128
        if 128 <= t < D:
            tk = t

    # VMEM budget: double-buffered pipelined tiles + weight block(s) (counted 2x,
    # since the default pipeline also double-buffers grid-invariant operands),
    # plus f32 accumulator / LayerNorm intermediates and headroom.
    if vmem_limit_bytes is None:
        kdim = tk if tk is not None else D
        est = 2 * (tn * kdim * 4          # x tiles
                   + tn * D * 4           # residual tiles
                   + tn * D * out_bytes   # output tiles
                   + kdim * D * w_bytes   # weight block(s)
                   + 3 * D * 4)           # bias / gamma / beta
        est += tn * D * 4                 # accumulator / LN intermediates
        vmem_limit_bytes = int(min(max(int(est * 1.5) + (4 << 20), 32 << 20),
                                   64 << 20))

    if tk is None:
        kernel = functools.partial(_gat_self_output_kernel, eps=eps)
        out = pl.pallas_call(
            kernel,
            out_shape=jax.ShapeDtypeStruct((N, D), out_dtype),
            grid=(n_row_blocks,),
            in_specs=[
                pl.BlockSpec((tn, D), lambda i: (i, 0)),   # x: pipelined row tiles
                pl.BlockSpec((D, D), lambda i: (0, 0)),    # W: resident (bf16)
                pl.BlockSpec((1, D), lambda i: (0, 0)),    # bias
                pl.BlockSpec((tn, D), lambda i: (i, 0)),   # residual tiles
                pl.BlockSpec((1, D), lambda i: (0, 0)),    # gamma
                pl.BlockSpec((1, D), lambda i: (0, 0)),    # beta
            ],
            out_specs=pl.BlockSpec((tn, D), lambda i: (i, 0)),
            compiler_params=pltpu.CompilerParams(
                dimension_semantics=("parallel",),
                vmem_limit_bytes=vmem_limit_bytes),
        )(x, w_mat, b2, r, g2, be2)
    else:
        nk = D // tk
        kernel = functools.partial(_gat_self_output_ktiled_kernel, eps=eps)
        out = pl.pallas_call(
            kernel,
            out_shape=jax.ShapeDtypeStruct((N, D), out_dtype),
            grid=(n_row_blocks, nk),
            in_specs=[
                pl.BlockSpec((tn, tk), lambda i, k: (i, k)),   # x: (row, K) tiles
                pl.BlockSpec((tk, D), lambda i, k: (k, 0)),    # W: K slabs
                pl.BlockSpec((1, D), lambda i, k: (0, 0)),     # bias
                pl.BlockSpec((tn, D), lambda i, k: (i, 0)),    # residual (per row block)
                pl.BlockSpec((1, D), lambda i, k: (0, 0)),     # gamma
                pl.BlockSpec((1, D), lambda i, k: (0, 0)),     # beta
            ],
            out_specs=pl.BlockSpec((tn, D), lambda i, k: (i, 0)),
            scratch_shapes=[pltpu.VMEM((tn, D), jnp.float32)],
            compiler_params=pltpu.CompilerParams(
                dimension_semantics=("parallel", "arbitrary"),
                vmem_limit_bytes=vmem_limit_bytes),
        )(x, w_mat, b2, r, g2, be2)

    return out.reshape(B, S, D)


# ---------------------------------------------------------------------------
# Pure-JAX reference (f32, highest precision) for correctness checks
# ---------------------------------------------------------------------------
def gat_self_output_reference(hidden_states, input_tensor, w, b, gamma, beta,
                              eps=1e-12):
    y = jnp.einsum("bsd,de->bse", hidden_states, w,
                   precision=lax.Precision.HIGHEST) + b + input_tensor
    u = jnp.mean(y, axis=-1, keepdims=True)
    s = jnp.mean((y - u) ** 2, axis=-1, keepdims=True)
    return gamma * (y - u) / jnp.sqrt(s + eps) + beta


# ---------------------------------------------------------------------------
if __name__ == "__main__":
    # --- Main path: resident bf16 weight, multi-step row grid with ragged tail ---
    B, S, D = 2, 200, 128          # N = 400 rows -> grid (4,) with a masked 16-row tail
    key = jax.random.PRNGKey(0)
    k_h, k_r, k_w, k_b, k_g, k_be = jax.random.split(key, 6)

    hidden_states = jax.random.normal(k_h, (B, S, D), dtype=jnp.float32)
    input_tensor = jax.random.normal(k_r, (B, S, D), dtype=jnp.float32)
    w = 0.02 * jax.random.normal(k_w, (D, D), dtype=jnp.float32)   # (in, out) == weight.T
    b = 0.02 * jax.random.normal(k_b, (D,), dtype=jnp.float32)
    gamma = 1.0 + 0.1 * jax.random.normal(k_g, (D,), dtype=jnp.float32)
    beta = 0.1 * jax.random.normal(k_be, (D,), dtype=jnp.float32)

    out = gat_self_output(hidden_states, input_tensor, w, b, gamma, beta,
                          block_rows=128)                  # small tile to exercise pipelining
    out = jax.block_until_ready(out)

    ref = gat_self_output_reference(hidden_states, input_tensor, w, b, gamma, beta)
    max_err = float(jnp.max(jnp.abs(out - ref)))
    assert out.shape == (B, S, D)
    assert bool(jnp.isfinite(out).all())
    assert max_err < 3e-2, f"resident path: max abs error vs reference: {max_err}"

    # --- K-tiled path (auto-selected for large hidden sizes / v7x); forced here ---
    D2 = 256
    k2 = jax.random.split(jax.random.PRNGKey(1), 4)
    h2 = jax.random.normal(k2[0], (2, 72, D2), dtype=jnp.float32)
    r2 = jax.random.normal(k2[1], (2, 72, D2), dtype=jnp.float32)
    w2 = 0.02 * jax.random.normal(k2[2], (D2, D2), dtype=jnp.float32)
    b2v = 0.02 * jax.random.normal(k2[3], (D2,), dtype=jnp.float32)
    g2v = jnp.ones((D2,), jnp.float32)
    be2v = jnp.zeros((D2,), jnp.float32)

    out2 = gat_self_output(h2, r2, w2, b2v, g2v, be2v, block_rows=64, block_k=128)
    out2 = jax.block_until_ready(out2)
    ref2 = gat_self_output_reference(h2, r2, w2, b2v, g2v, be2v)
    err2 = float(jnp.max(jnp.abs(out2 - ref2)))
    assert bool(jnp.isfinite(out2).all())
    assert err2 < 3e-2, f"k-tiled path: max abs error vs reference: {err2}"

    print("KERNEL_OK")
</pallas_src>

<mosaic_0001>
module attributes {stable_mosaic.version = 11 : i64} {
  func.func @_gat_self_output_kernel(%arg0: i32, %arg1: memref<128x128xf32, #tpu.memory_space<vmem>>, %arg2: memref<128x128xbf16, #tpu.memory_space<vmem>>, %arg3: memref<1x128xf32, #tpu.memory_space<vmem>>, %arg4: memref<128x128xf32, #tpu.memory_space<vmem>>, %arg5: memref<1x128xf32, #tpu.memory_space<vmem>>, %arg6: memref<1x128xf32, #tpu.memory_space<vmem>>, %arg7: memref<128x128xf32, #tpu.memory_space<vmem>>) attributes {dimension_semantics = [#tpu.dimension_semantics<parallel>], iteration_bounds = array<i64: 4>, scalar_prefetch = 0 : i64, scratch_operands = 0 : i64, tpu.core_type = #tpu.core_type<tc>, window_params = [{transform_indices = @transform_0, window_bounds = array<i64: 128, 128>}, {pipeline_mode = #tpu.pipeline_mode<synchronous>, transform_indices = @transform_1, window_bounds = array<i64: 128, 128>}, {pipeline_mode = #tpu.pipeline_mode<synchronous>, transform_indices = @transform_2, window_bounds = array<i64: 1, 128>}, {transform_indices = @transform_3, window_bounds = array<i64: 128, 128>}, {pipeline_mode = #tpu.pipeline_mode<synchronous>, transform_indices = @transform_4, window_bounds = array<i64: 1, 128>}, {pipeline_mode = #tpu.pipeline_mode<synchronous>, transform_indices = @transform_5, window_bounds = array<i64: 1, 128>}, {transform_indices = @transform_6, window_bounds = array<i64: 128, 128>}]} {
    %c0 = arith.constant 0 : index
    %c0_0 = arith.constant 0 : index
    %0 = vector.load %arg2[%c0, %c0_0] : memref<128x128xbf16, #tpu.memory_space<vmem>>, vector<128x128xbf16>
    %c0_1 = arith.constant 0 : index
    %c0_2 = arith.constant 0 : index
    %1 = vector.load %arg1[%c0_1, %c0_2] : memref<128x128xf32, #tpu.memory_space<vmem>>, vector<128x128xf32>
    %2 = arith.truncf %1 : vector<128x128xf32> to vector<128x128xbf16>
    %cst = arith.constant dense<0.000000e+00> : vector<128x128xf32>
    %3 = tpu.matmul %2, %0, %cst {dimension_numbers = #tpu.dot_dimension_numbers<[1], [0], [0], [1], [0, 0, 1, 1], [], []>} : vector<128x128xbf16>, vector<128x128xbf16>, vector<128x128xf32> -> vector<128x128xf32>
    %c0_3 = arith.constant 0 : index
    %c0_4 = arith.constant 0 : index
    %4 = vector.load %arg3[%c0_3, %c0_4] : memref<1x128xf32, #tpu.memory_space<vmem>>, vector<1x128xf32>
    %5 = vector.broadcast %4 : vector<1x128xf32> to vector<128x128xf32>
    %6 = arith.addf %3, %5 : vector<128x128xf32>
    %c0_5 = arith.constant 0 : index
    %c0_6 = arith.constant 0 : index
    %7 = vector.load %arg4[%c0_5, %c0_6] : memref<128x128xf32, #tpu.memory_space<vmem>>, vector<128x128xf32>
    %8 = arith.addf %6, %7 : vector<128x128xf32>
    %c0_7 = arith.constant 0 : index
    %c0_8 = arith.constant 0 : index
    %9 = vector.load %arg5[%c0_7, %c0_8] : memref<1x128xf32, #tpu.memory_space<vmem>>, vector<1x128xf32>
    %c0_9 = arith.constant 0 : index
    %c0_10 = arith.constant 0 : index
    %10 = vector.load %arg6[%c0_9, %c0_10] : memref<1x128xf32, #tpu.memory_space<vmem>>, vector<1x128xf32>
    %cst_11 = arith.constant dense<0.000000e+00> : vector<128xf32>
    %11 = vector.multi_reduction <add>, %8, %cst_11 [1] : vector<128x128xf32> to vector<128xf32>
    %12 = vector.shape_cast %11 : vector<128xf32> to vector<128x1xf32>
    %cst_12 = arith.constant 1.280000e+02 : f32
    %13 = vector.broadcast %cst_12 : f32 to vector<128x1xf32>
    %14 = arith.divf %12, %13 : vector<128x1xf32>
    %15 = vector.broadcast %14 : vector<128x1xf32> to vector<128x128xf32>
    %16 = arith.subf %8, %15 : vector<128x128xf32>
    %17 = arith.mulf %16, %16 : vector<128x128xf32>
    %cst_13 = arith.constant dense<0.000000e+00> : vector<128xf32>
    %18 = vector.multi_reduction <add>, %17, %cst_13 [1] : vector<128x128xf32> to vector<128xf32>
    %19 = vector.shape_cast %18 : vector<128xf32> to vector<128x1xf32>
    %cst_14 = arith.constant 1.280000e+02 : f32
    %20 = vector.broadcast %cst_14 : f32 to vector<128x1xf32>
    %21 = arith.divf %19, %20 : vector<128x1xf32>
    %cst_15 = arith.constant 9.99999996E-13 : f32
    %22 = vector.broadcast %cst_15 : f32 to vector<128x1xf32>
    %23 = arith.addf %21, %22 : vector<128x1xf32>
    %24 = math.rsqrt %23 : vector<128x1xf32>
    %25 = vector.broadcast %24 : vector<128x1xf32> to vector<128x128xf32>
    %26 = arith.mulf %16, %25 : vector<128x128xf32>
    %27 = vector.broadcast %9 : vector<1x128xf32> to vector<128x128xf32>
    %28 = arith.mulf %27, %26 : vector<128x128xf32>
    %29 = vector.broadcast %10 : vector<1x128xf32> to vector<128x128xf32>
    %30 = arith.addf %28, %29 : vector<128x128xf32>
    %c0_16 = arith.constant 0 : index
    %c0_17 = arith.constant 0 : index
    %31 = vector.load %arg7[%c0_16, %c0_17] : memref<128x128xf32, #tpu.memory_space<vmem>>, vector<128x128xf32>
    tpu.vector_store %arg7[%c0_16, %c0_17], %30 {strides = array<i32>} : memref<128x128xf32, #tpu.memory_space<vmem>>, vector<128x128xf32>,
    return
  }
  func.func @transform_0(%arg0: i32) -> (i32, i32) {
    %c0_i32 = arith.constant 0 : i32
    %c0_i32_0 = arith.constant 0 : i32
    return %arg0, %c0_i32 : i32, i32
  }
  func.func @transform_1(%arg0: i32) -> (i32, i32) {
    %c0_i32 = arith.constant 0 : i32
    %c0_i32_0 = arith.constant 0 : i32
    %c0_i32_1 = arith.constant 0 : i32
    return %c0_i32, %c0_i32_0 : i32, i32
  }
  func.func @transform_2(%arg0: i32) -> (i32, i32) {
    %c0_i32 = arith.constant 0 : i32
    %c0_i32_0 = arith.constant 0 : i32
    %c0_i32_1 = arith.constant 0 : i32
    return %c0_i32, %c0_i32_0 : i32, i32
  }
  func.func @transform_3(%arg0: i32) -> (i32, i32) {
    %c0_i32 = arith.constant 0 : i32
    %c0_i32_0 = arith.constant 0 : i32
    return %arg0, %c0_i32 : i32, i32
  }
  func.func @transform_4(%arg0: i32) -> (i32, i32) {
    %c0_i32 = arith.constant 0 : i32
    %c0_i32_0 = arith.constant 0 : i32
    %c0_i32_1 = arith.constant 0 : i32
    return %c0_i32, %c0_i32_0 : i32, i32
  }
  func.func @transform_5(%arg0: i32) -> (i32, i32) {
    %c0_i32 = arith.constant 0 : i32
    %c0_i32_0 = arith.constant 0 : i32
    %c0_i32_1 = arith.constant 0 : i32
    return %c0_i32, %c0_i32_0 : i32, i32
  }
  func.func @transform_6(%arg0: i32) -> (i32, i32) {
    %c0_i32 = arith.constant 0 : i32
    %c0_i32_0 = arith.constant 0 : i32
    return %arg0, %c0_i32 : i32, i32
  }
}

</mosaic_0001>

<llo_original>
// kernel: tpu_custom_call.1
$region0: #{tpu_custom_call.1}
  #allocation0 [shape = 'u32[]', space=smem, size = 0x4, offset = 0x4, fixed_abs, tag = 'smem constant byte address 0x4 - core index']
  #allocation1 [shape = 'u32[144,128]{1,0:T(1,128)}', space=vmem, size = 0x12000, scoped, tag = 'internal scratch']
  %s0 = inlined_call_operand.hbm [shape: f32[400,128], index: 0, kind: input, shape index: {}]
  %s1 = inlined_call_operand.hbm [shape: bf16[128,128], index: 1, kind: input, shape index: {}]
  %s2 = inlined_call_operand.vmem [shape: f32[1,128], index: 2, kind: input, shape index: {}]
  %s3 = inlined_call_operand.hbm [shape: f32[400,128], index: 3, kind: input, shape index: {}]
  %s4 = inlined_call_operand.vmem [shape: f32[1,128], index: 4, kind: input, shape index: {}]
  %s5 = inlined_call_operand.vmem [shape: f32[1,128], index: 5, kind: input, shape index: {}]
  %s6 = inlined_call_operand.hbm [shape: f32[400,128], index: 6, kind: output, shape index: {}]
  %s7 = sld [smem:[#allocation0]]
  $region69: #{tpu_custom_call.1} parent=0
    _
  %s9 = ssub.s32 1, %s7
  %s10 = scalar_select 0, %s9, %s7
  $region1: #{tpu_custom_call.1} parent=0
    #allocation2 [shape = 'u8[131072]{0}', space=vmem, size = 0x20000, scoped, tag = 'input window, operand 0']
    #allocation3 [shape = 's32[2]{0}', space=sflag, size = 0x8, scoped, tag = 'scoped memory for tpu_custom_call.1']
    #allocation4 [shape = 's32[2]{0}', space=sflag, size = 0x8, scoped, tag = 'scoped memory for tpu_custom_call.1']
    #allocation5 [shape = 'u8[32768]{0}', space=vmem, size = 0x8000, scoped, tag = 'input window, operand 1, single buffered']
    #allocation6 [shape = 's32[1]{0}', space=sflag, size = 0x4, scoped, tag = 'scoped memory for tpu_custom_call.1']
    #allocation7 [shape = 'u8[131072]{0}', space=vmem, size = 0x20000, scoped, tag = 'input window, operand 3']
    #allocation8 [shape = 'u8[131072]{0}', space=vmem, size = 0x20000, scoped, tag = 'output window, operand 0']
    %11 = vsyncpa [#allocation3], 0
    %s12 = scalar_lea.sflag [#allocation3], 1
    %13 = vsyncpa %s12, 0
    %14 = vsyncpa [#allocation6], 0
    %15 = vsyncpa [#allocation4], 0
    %s16 = scalar_lea.sflag [#allocation4], 1
    %17 = vsyncpa %s16, 0
    loop: start=0, step=1, limit=6
    $region2: #{tpu_custom_call.1} parent=1 // loop_pre_header
      _
    $region3: #{tpu_custom_call.1} parent=1 // loop_header
      %s19 = sphi 0, %s23
      %p20 = scmp.ge.s32.totalorder %s19, 6
      %s29 = sphi 0, %s31
      %s32 = sphi 0, %s29
      %s33 = sphi 0, %s32
      %s49 = sphi 0, %s33
      %s53 = sphi 0, %s53
      %s55 = sphi 0, %s53
      %s56 = sphi 0, %s55
      %s70 = sphi 0, %s56
      %s74 = sphi 0, %s74
      %s76 = sphi 0, %s74
      %s77 = sphi 0, %s76
      %s91 = sphi 0, %s77
      %s97 = sphi 0, %s99
      %s100 = sphi 0, %s97
      %s101 = sphi 0, %s100
      %s117 = sphi 0, %s101
      %s121 = sphi 0, %s121
      %s123 = sphi 0, %s121
      %s124 = sphi 0, %s123
      %s138 = sphi 0, %s124
      %s142 = sphi 0, %s142
      %s144 = sphi 0, %s142
      %s145 = sphi 0, %s144
      %s159 = sphi 0, %s145
      %s165 = sphi 0, %s167
      %s168 = sphi 0, %s165
      %s169 = sphi 0, %s168
      %s185 = sphi 0, %s169
    $region4: #{tpu_custom_call.1} parent=1 // loop_header_branch
      %22 = sbr.rel (%p20) target = $region8
    $region5: #{tpu_custom_call.1} parent=1 // loop_body
      %s24 = ssub.s32 %s19, 1
      %s25 = ssub.s32 %s19, 2
      %s26 = sadd.s32 %s19, 1
      %s27 = ssub.s32 %s19, %s26
      %p28 = scmp.eq.s32.totalorder %s27, 0
      %s30 = sadd.s32 %s29, 1
      %s31 = scalar_select %p28, %s29, %s30
      %p34 = pneg %p28
      %p35 = scmp.eq.s32.totalorder %s19, 3
      %p36 = por %p34, %p35
      %p37 = scmp.ne.s32.totalorder %s29, %s32
      %p38 = scmp.eq.s32.totalorder %s19, 0
      %p39 = por %p37, %p38
      %p40 = scmp.ne.s32.totalorder %s29, %s32
      %p41 = scmp.eq.s32.totalorder %s24, 3
      %p42 = por %p40, %p41
      %p43 = scmp.ne.s32.totalorder %s32, %s33
      %p44 = scmp.eq.s32.totalorder %s24, 0
      %p45 = por %p43, %p44
      %p46 = scmp.ne.s32.totalorder %s32, %s33
      %p47 = scmp.eq.s32.totalorder %s25, 3
      %p48 = por %p46, %p47
      %p50 = scmp.ne.s32.totalorder %s33, %s49
      %p51 = scmp.eq.s32.totalorder %s25, 0
      %p52 = por %p50, %p51
      %s54 = sadd.s32 %s53, 1
      %p57 = scmp.eq.s32.totalorder %s19, 3
      %p58 = scmp.ne.s32.totalorder %s53, %s55
      %p59 = scmp.eq.s32.totalorder %s19, 0
      %p60 = por %p58, %p59
      %p61 = scmp.ne.s32.totalorder %s53, %s55
      %p62 = scmp.eq.s32.totalorder %s24, 3
      %p63 = por %p61, %p62
      %p64 = scmp.ne.s32.totalorder %s55, %s56
      %p65 = scmp.eq.s32.totalorder %s24, 0
      %p66 = por %p64, %p65
      %p67 = scmp.ne.s32.totalorder %s55, %s56
      %p68 = scmp.eq.s32.totalorder %s25, 3
      %p69 = por %p67, %p68
      %p71 = scmp.ne.s32.totalorder %s56, %s70
      %p72 = scmp.eq.s32.totalorder %s25, 0
      %p73 = por %p71, %p72
      %s75 = sadd.s32 %s74, 1
      %p78 = scmp.eq.s32.totalorder %s19, 3
      %p79 = scmp.ne.s32.totalorder %s74, %s76
      %p80 = scmp.eq.s32.totalorder %s19, 0
      %p81 = por %p79, %p80
      %p82 = scmp.ne.s32.totalorder %s74, %s76
      %p83 = scmp.eq.s32.totalorder %s24, 3
      %p84 = por %p82, %p83
      %p85 = scmp.ne.s32.totalorder %s76, %s77
      %p86 = scmp.eq.s32.totalorder %s24, 0
      %p87 = por %p85, %p86
      %p88 = scmp.ne.s32.totalorder %s76, %s77
      %p89 = scmp.eq.s32.totalorder %s25, 3
      %p90 = por %p88, %p89
      %p92 = scmp.ne.s32.totalorder %s77, %s91
      %p93 = scmp.eq.s32.totalorder %s25, 0
      %p94 = por %p92, %p93
      %s95 = ssub.s32 %s19, %s26
      %p96 = scmp.eq.s32.totalorder %s95, 0
      %s98 = sadd.s32 %s97, 1
      %s99 = scalar_select %p96, %s97, %s98
      %p102 = pneg %p96
      %p103 = scmp.eq.s32.totalorder %s19, 3
      %p104 = por %p102, %p103
      %p105 = scmp.ne.s32.totalorder %s97, %s100
      %p106 = scmp.eq.s32.totalorder %s19, 0
      %p107 = por %p105, %p106
      %p108 = scmp.ne.s32.totalorder %s97, %s100
      %p109 = scmp.eq.s32.totalorder %s24, 3
      %p110 = por %p108, %p109
      %p111 = scmp.ne.s32.totalorder %s100, %s101
      %p112 = scmp.eq.s32.totalorder %s24, 0
      %p113 = por %p111, %p112
      %p114 = scmp.ne.s32.totalorder %s100, %s101
      %p115 = scmp.eq.s32.totalorder %s25, 3
      %p116 = por %p114, %p115
      %p118 = scmp.ne.s32.totalorder %s101, %s117
      %p119 = scmp.eq.s32.totalorder %s25, 0
      %p120 = por %p118, %p119
      %s122 = sadd.s32 %s121, 1
      %p125 = scmp.eq.s32.totalorder %s19, 3
      %p126 = scmp.ne.s32.totalorder %s121, %s123
      %p127 = scmp.eq.s32.totalorder %s19, 0
      %p128 = por %p126, %p127
      %p129 = scmp.ne.s32.totalorder %s121, %s123
      %p130 = scmp.eq.s32.totalorder %s24, 3
      %p131 = por %p129, %p130
      %p132 = scmp.ne.s32.totalorder %s123, %s124
      %p133 = scmp.eq.s32.totalorder %s24, 0
      %p134 = por %p132, %p133
      %p135 = scmp.ne.s32.totalorder %s123, %s124
      %p136 = scmp.eq.s32.totalorder %s25, 3
      %p137 = por %p135, %p136
      %p139 = scmp.ne.s32.totalorder %s124, %s138
      %p140 = scmp.eq.s32.totalorder %s25, 0
      %p141 = por %p139, %p140
      %s143 = sadd.s32 %s142, 1
      %p146 = scmp.eq.s32.totalorder %s19, 3
      %p147 = scmp.ne.s32.totalorder %s142, %s144
      %p148 = scmp.eq.s32.totalorder %s19, 0
      %p149 = por %p147, %p148
      %p150 = scmp.ne.s32.totalorder %s142, %s144
      %p151 = scmp.eq.s32.totalorder %s24, 3
      %p152 = por %p150, %p151
      %p153 = scmp.ne.s32.totalorder %s144, %s145
      %p154 = scmp.eq.s32.totalorder %s24, 0
      %p155 = por %p153, %p154
      %p156 = scmp.ne.s32.totalorder %s144, %s145
      %p157 = scmp.eq.s32.totalorder %s25, 3
      %p158 = por %p156, %p157
      %p160 = scmp.ne.s32.totalorder %s145, %s159
      %p161 = scmp.eq.s32.totalorder %s25, 0
      %p162 = por %p160, %p161
      %s163 = ssub.s32 %s19, %s26
      %p164 = scmp.eq.s32.totalorder %s163, 0
      %s166 = sadd.s32 %s165, 1
      %s167 = scalar_select %p164, %s165, %s166
      %p170 = pneg %p164
      %p171 = scmp.eq.s32.totalorder %s19, 3
      %p172 = por %p170, %p171
      %p173 = scmp.ne.s32.totalorder %s165, %s168
      %p174 = scmp.eq.s32.totalorder %s19, 0
      %p175 = por %p173, %p174
      %p176 = scmp.ne.s32.totalorder %s165, %s168
      %p177 = scmp.eq.s32.totalorder %s24, 3
      %p178 = por %p176, %p177
      %p179 = scmp.ne.s32.totalorder %s168, %s169
      %p180 = scmp.eq.s32.totalorder %s24, 0
      %p181 = por %p179, %p180
      %p182 = scmp.ne.s32.totalorder %s168, %s169
      %p183 = scmp.eq.s32.totalorder %s25, 3
      %p184 = por %p182, %p183
      %p186 = scmp.ne.s32.totalorder %s169, %s185
      %p187 = scmp.eq.s32.totalorder %s25, 0
      %p188 = por %p186, %p187
      %p189 = scmp.le.s32.totalorder 1, %s19
      %p190 = scmp.lt.s32.totalorder %s19, 5
      %p191 = pnand %p189, %p190
      %p192 = pneg %p191
      // Predicated region
      $region9: #{tpu_custom_call.1} parent=5 // pred_check
        _
      $region10: #{tpu_custom_call.1} parent=5 // pred_check_branch
        %194 = sbr.rel (%p191) target = $region12
      $region11: #{tpu_custom_call.1} parent=5 // pred_region
        %s195 = ssub.s32 %s19, 1
        // Predicated region
        $region13: #{tpu_custom_call.1} parent=11 // pred_check
          %p196 = pneg %p66
        $region14: #{tpu_custom_call.1} parent=11 // pred_check_branch
          %198 = sbr.rel (%p196) target = $region16
        $region15: #{tpu_custom_call.1} parent=11 // pred_region
          %s200 = ssub.s32 1024, 1024
          %201 = vsyncadd [#allocation6], %s200
          %s202 = sshll.u32 [#allocation5], 4
          %s203 = int_to_ptr.vmem [resolvable:$true] %s202
          %208 = dma.hbm_to_vmem [thread:$0]  %s1, 1024, %s203, [#allocation6], 64, 64, 4
        $region16: #{tpu_custom_call.1} parent=11 // pred_fallthru
          _
        // Predicated region
        $region17: #{tpu_custom_call.1} parent=11 // pred_check
          %p209 = pneg %p87
        $region18: #{tpu_custom_call.1} parent=11 // pred_check_branch
          %211 = sbr.rel (%p209) target = $region20
        $region19: #{tpu_custom_call.1} parent=11 // pred_region
          _
        $region20: #{tpu_custom_call.1} parent=11 // pred_fallthru
          _
        // Predicated region
        $region21: #{tpu_custom_call.1} parent=11 // pred_check
          %p212 = pneg %p134
        $region22: #{tpu_custom_call.1} parent=11 // pred_check_branch
          %214 = sbr.rel (%p212) target = $region24
        $region23: #{tpu_custom_call.1} parent=11 // pred_region
          _
        $region24: #{tpu_custom_call.1} parent=11 // pred_fallthru
          _
        // Predicated region
        $region25: #{tpu_custom_call.1} parent=11 // pred_check
          %p215 = pneg %p155
        $region26: #{tpu_custom_call.1} parent=11 // pred_check_branch
          %217 = sbr.rel (%p215) target = $region28
        $region27: #{tpu_custom_call.1} parent=11 // pred_region
          _
        $region28: #{tpu_custom_call.1} parent=11 // pred_fallthru
          _
      $region12: #{tpu_custom_call.1} parent=5 // pred_fallthru
        _
      %p218 = scmp.lt.s32.totalorder %s19, 4
      // Predicated region
      $region29: #{tpu_custom_call.1} parent=5 // pred_check
        %p219 = pneg %p218
      $region30: #{tpu_custom_call.1} parent=5 // pred_check_branch
        %221 = sbr.rel (%p219) target = $region32
      $region31: #{tpu_custom_call.1} parent=5 // pred_region
        // Predicated region
        $region33: #{tpu_custom_call.1} parent=31 // pred_check
          %p222 = pneg %p39
        $region34: #{tpu_custom_call.1} parent=31 // pred_check_branch
          %224 = sbr.rel (%p222) target = $region36
        $region35: #{tpu_custom_call.1} parent=31 // pred_region
          %s225 = sand.u32 %s19, 1
          %s226 = scalar_lea.sflag [#allocation3], %s225
          %s227 = sand.u32 %s29, 1
          %s228 = smul.addr %s227, 128
          %s229 = scalar_lea.vmem [#allocation2], %s228
          %s230 = smul.u32 16, %s19
          %s231 = ssub.s32 50, %s230
          %p232 = scmp.lt.s32.totalorder %s231, 16
          %s233 = scalar_select %p232, %s231, 16
          %s234 = smul.u32 128, %s233
          %s236 = ssub.s32 2048, %s234
          %237 = vsyncadd %s226, %s236
          %p238 = scmp.ne.s32.totalorder 0, %s234
          %s239 = smul.addr %s230, 128
          %s240 = scalar_lea.hbm %s0, %s239
          %s241 = smul.u32 8, %s233
          %s242 = sshll.u32 %s229, 4
          %s243 = int_to_ptr.vmem [resolvable:$true] %s242
          %s244 = sshll.u32 %s241, 4
          %248 = dma.hbm_to_vmem [thread:$0]  (%p238), %s240, %s244, %s243, %s226, 128, 128, 8
        $region36: #{tpu_custom_call.1} parent=31 // pred_fallthru
          _
        // Predicated region
        $region37: #{tpu_custom_call.1} parent=31 // pred_check
          %p249 = pneg %p107
        $region38: #{tpu_custom_call.1} parent=31 // pred_check_branch
          %251 = sbr.rel (%p249) target = $region40
        $region39: #{tpu_custom_call.1} parent=31 // pred_region
          %s252 = sand.u32 %s19, 1
          %s253 = scalar_lea.sflag [#allocation3], %s252
          %s254 = sand.u32 %s97, 1
          %s255 = smul.addr %s254, 128
          %s256 = scalar_lea.vmem [#allocation7], %s255
          %s257 = smul.u32 16, %s19
          %s258 = ssub.s32 50, %s257
          %p259 = scmp.lt.s32.totalorder %s258, 16
          %s260 = scalar_select %p259, %s258, 16
          %s261 = smul.u32 128, %s260
          %s263 = ssub.s32 2048, %s261
          %264 = vsyncadd %s253, %s263
          %p265 = scmp.ne.s32.totalorder 0, %s261
          %s266 = smul.addr %s257, 128
          %s267 = scalar_lea.hbm %s3, %s266
          %s268 = smul.u32 8, %s260
          %s269 = sshll.u32 %s256, 4
          %s270 = int_to_ptr.vmem [resolvable:$true] %s269
          %s271 = sshll.u32 %s268, 4
          %275 = dma.hbm_to_vmem [thread:$0]  (%p265), %s267, %s271, %s270, %s253, 128, 128, 8
        $region40: #{tpu_custom_call.1} parent=31 // pred_fallthru
          _
      $region32: #{tpu_custom_call.1} parent=5 // pred_fallthru
        _
      %p276 = scmp.le.s32.totalorder 1, %s19
      %p277 = scmp.lt.s32.totalorder %s19, 5
      %p278 = pnand %p276, %p277
      %p279 = pneg %p278
      // Predicated region
      $region41: #{tpu_custom_call.1} parent=5 // pred_check
        _
      $region42: #{tpu_custom_call.1} parent=5 // pred_check_branch
        %281 = sbr.rel (%p278) target = $region44
      $region43: #{tpu_custom_call.1} parent=5 // pred_region
        %s282 = ssub.s32 %s19, 1
        %s283 = sand.u32 %s24, 1
        %s284 = scalar_lea.sflag [#allocation3], %s283
        %s285 = sand.u32 %s32, 1
        %s286 = smul.addr %s285, 128
        %s287 = scalar_lea.vmem [#allocation2], %s286
        // Predicated region
        $region45: #{tpu_custom_call.1} parent=43 // pred_check
          %p288 = pneg %p45
        $region46: #{tpu_custom_call.1} parent=43 // pred_check_branch
          %290 = sbr.rel (%p288) target = $region48
        $region47: #{tpu_custom_call.1} parent=43 // pred_region
          %291 = dma.done %s284, 2048
        $region48: #{tpu_custom_call.1} parent=43 // pred_fallthru
          _
        // Predicated region
        $region49: #{tpu_custom_call.1} parent=43 // pred_check
          %p292 = pneg %p66
        $region50: #{tpu_custom_call.1} parent=43 // pred_check_branch
          %294 = sbr.rel (%p292) target = $region52
        $region51: #{tpu_custom_call.1} parent=43 // pred_region
          %295 = dma.done [#allocation6], 1024
        $region52: #{tpu_custom_call.1} parent=43 // pred_fallthru
          _
        %s296 = sand.u32 %s24, 1
        %s297 = scalar_lea.sflag [#allocation3], %s296
        %s298 = sand.u32 %s100, 1
        %s299 = smul.addr %s298, 128
        %s300 = scalar_lea.vmem [#allocation7], %s299
        // Predicated region
        $region53: #{tpu_custom_call.1} parent=43 // pred_check
          %p301 = pneg %p113
        $region54: #{tpu_custom_call.1} parent=43 // pred_check_branch
          %303 = sbr.rel (%p301) target = $region56
        $region55: #{tpu_custom_call.1} parent=43 // pred_region
          %304 = dma.done %s297, 2048
        $region56: #{tpu_custom_call.1} parent=43 // pred_fallthru
          _
        %s305 = sand.u32 %s24, 1
        %s306 = scalar_lea.sflag [#allocation3], %s305
        %s307 = sand.u32 %s32, 1
        %s308 = smul.addr %s307, 128
        %s309 = scalar_lea.vmem [#allocation2], %s308
        %p310 = pneg %p45
        %p311 = pneg %p42
        %p312 = pneg %p66
        %p313 = pneg %p63
        %p314 = pneg %p87
        %p315 = pneg %p84
        %s316 = sand.u32 %s24, 1
        %s317 = scalar_lea.sflag [#allocation3], %s316
        %s318 = sand.u32 %s100, 1
        %s319 = smul.addr %s318, 128
        %s320 = scalar_lea.vmem [#allocation7], %s319
        %p321 = pneg %p113
        %p322 = pneg %p110
        %p323 = pneg %p134
        %p324 = pneg %p131
        %p325 = pneg %p155
        %p326 = pneg %p152
        %p327 = pneg %p181
        %p328 = pneg %p178
        %s329 = sand.u32 %s168, 1
        %s330 = scalar_lea.sflag [#allocation4], %s329
        %s331 = sand.u32 %s168, 1
        %s332 = smul.addr %s331, 128
        %s333 = scalar_lea.vmem [#allocation8], %s332
        %s334 = smul.u32 16, %s24
        %s335 = ssub.s32 50, %s334
        %p336 = scmp.lt.s32.totalorder %s335, 16
        %s337 = scalar_select %p336, %s335, 16
        %s338 = smul.u32 128, %s337
        %s339 = smul.u32 16, %s24
        %s340 = ssub.s32 50, %s339
        %p341 = scmp.lt.s32.totalorder %s340, 16
        %s342 = scalar_select %p341, %s340, 16
        %s343 = smul.u32 128, %s342
        %s344 = smul.u32 16, %s24
        %s345 = ssub.s32 50, %s344
        %p346 = scmp.lt.s32.totalorder %s345, 16
        %s347 = scalar_select %p346, %s345, 16
        %s348 = smul.u32 128, %s347
        %v350 = vld [vmem:[#allocation5] sm:$0xf]
        %v351 = vld [vmem:[#allocation5 + $0x4] sm:$0xf]
        %v352 = vld [vmem:[#allocation5 + $0x8] sm:$0xf]
        %v353 = vld [vmem:[#allocation5 + $0xc] sm:$0xf]
        %v354 = vld [vmem:[#allocation5 + $0x10] sm:$0xf]
        %v355 = vld [vmem:[#allocation5 + $0x14] sm:$0xf]
        %v356 = vld [vmem:[#allocation5 + $0x18] sm:$0xf]
        %v357 = vld [vmem:[#allocation5 + $0x1c] sm:$0xf]
        %v358 = vld [vmem:[#allocation5 + $0x20] sm:$0xf]
        %v359 = vld [vmem:[#allocation5 + $0x24] sm:$0xf]
        %v360 = vld [vmem:[#allocation5 + $0x28] sm:$0xf]
        %v361 = vld [vmem:[#allocation5 + $0x2c] sm:$0xf]
        %v362 = vld [vmem:[#allocation5 + $0x30] sm:$0xf]
        %v363 = vld [vmem:[#allocation5 + $0x34] sm:$0xf]
        %v364 = vld [vmem:[#allocation5 + $0x38] sm:$0xf]
        %v365 = vld [vmem:[#allocation5 + $0x3c] sm:$0xf]
        %v366 = vld [vmem:[%s287] sm:$0xff]
        %v367 = vld [vmem:[%s287 + $0x8] sm:$0xff]
        %v368 = vld [vmem:[%s287 + $0x10] sm:$0xff]
        %v369 = vld [vmem:[%s287 + $0x18] sm:$0xff]
        %v370 = vld [vmem:[%s287 + $0x20] sm:$0xff]
        %v371 = vld [vmem:[%s287 + $0x28] sm:$0xff]
        %v372 = vld [vmem:[%s287 + $0x30] sm:$0xff]
        %v373 = vld [vmem:[%s287 + $0x38] sm:$0xff]
        %v374 = vld [vmem:[%s287 + $0x40] sm:$0xff]
        %v375 = vld [vmem:[%s287 + $0x48] sm:$0xff]
        %v376 = vld [vmem:[%s287 + $0x50] sm:$0xff]
        %v377 = vld [vmem:[%s287 + $0x58] sm:$0xff]
        %v378 = vld [vmem:[%s287 + $0x60] sm:$0xff]
        %v379 = vld [vmem:[%s287 + $0x68] sm:$0xff]
        %v380 = vld [vmem:[%s287 + $0x70] sm:$0xff]
        %v381 = vld [vmem:[%s287 + $0x78] sm:$0xff]
        %v382 = vpack.c.bf16 %v367, %v366
        %v383 = vpack.c.bf16 %v369, %v368
        %v384 = vpack.c.bf16 %v371, %v370
        %v385 = vpack.c.bf16 %v373, %v372
        %v386 = vpack.c.bf16 %v375, %v374
        %v387 = vpack.c.bf16 %v377, %v376
        %v388 = vpack.c.bf16 %v379, %v378
        %v389 = vpack.c.bf16 %v381, %v380
        %v390 = vld [vmem:[%s2] sm:$0x1]
        %v392 = vlaneseq
        %v393 = vshrl.u32 %v392, 7
        %v394 = vsub.s32 0, %v393
        %v395 = vrot.slane %v390, %v394
        %v413 = vunpack.c.l.b16 %v350
        %v414 = vunpack.c.l.b16 %v351
        %v415 = vunpack.c.l.b16 %v352
        %v416 = vunpack.c.l.b16 %v353
        %v417 = vunpack.c.l.b16 %v354
        %v418 = vunpack.c.l.b16 %v355
        %v419 = vunpack.c.l.b16 %v356
        %v420 = vunpack.c.l.b16 %v357
        %v421 = vunpack.c.l.b16 %v358
        %v422 = vunpack.c.l.b16 %v359
        %v423 = vunpack.c.l.b16 %v360
        %v424 = vunpack.c.l.b16 %v361
        %v425 = vunpack.c.l.b16 %v362
        %v426 = vunpack.c.l.b16 %v363
        %v427 = vunpack.c.l.b16 %v364
        %v428 = vunpack.c.l.b16 %v365
        %v429 = vpack.c.b16 %v414, %v413
        %v430 = vpack.c.b16 %v416, %v415
        %v431 = vpack.c.b16 %v418, %v417
        %v432 = vpack.c.b16 %v420, %v419
        %v433 = vpack.c.b16 %v422, %v421
        %v434 = vpack.c.b16 %v424, %v423
        %v435 = vpack.c.b16 %v426, %v425
        %v436 = vpack.c.b16 %v428, %v427
        %445 = vmatprep.subr.bf16.mxu0 0
        %446 = vmatpush1.bf16.msra.mxu0 %v429
        %447 = vmatprep.subr.bf16.mxu0 0
        %448 = vmatpush1.bf16.msra.mxu0 %v430
        %449 = vmatprep.subr.bf16.mxu0 0
        %450 = vmatpush1.bf16.msra.mxu0 %v431
        %451 = vmatprep.subr.bf16.mxu0 0
        %452 = vmatpush1.bf16.msra.mxu0 %v432
        %453 = vmatprep.subr.bf16.mxu0 0
        %454 = vmatpush1.bf16.msra.mxu0 %v433
        %455 = vmatprep.subr.bf16.mxu0 0
        %456 = vmatpush1.bf16.msra.mxu0 %v434
        %457 = vmatprep.subr.bf16.mxu0 0
        %458 = vmatpush1.bf16.msra.mxu0 %v435
        %459 = vmatprep.subr.bf16.mxu0 0
        %460 = vmatpush1.bf16.msra.mxu0 %v436
        %461 = vmatprep.subr.bf16.mxu0 0
        %462 = vmatpush1.bf16.msra.mxu0 0
        %463 = vmatprep.subr.bf16.mxu0 0
        %464 = vmatpush1.bf16.msra.mxu0 0
        %465 = vmatprep.subr.bf16.mxu0 0
        %466 = vmatpush1.bf16.msra.mxu0 0
        %467 = vmatprep.subr.bf16.mxu0 0
        %468 = vmatpush1.bf16.msra.mxu0 0
        %469 = vmatprep.subr.bf16.mxu0 0
        %470 = vmatpush1.bf16.msra.mxu0 0
        %471 = vmatprep.subr.bf16.mxu0 0
        %472 = vmatpush1.bf16.msra.mxu0 0
        %473 = vmatprep.subr.bf16.mxu0 0
        %474 = vmatpush1.bf16.msra.mxu0 0
        %475 = vmatprep.subr.bf16.mxu0 0
        %476 = vmatpush1.bf16.msra.mxu0 0
        %477 = vmatprep.mubr.bf16.mxu0 0
        %478 = vmatmul.mubr.bf16.gmra.mrb[0].mxu0 %v382
        %v479 = vpop.f32.mrb[0].mxu0
        %v480 = vadd.f32 %v395, %v479
        %v481 = vpop.f32.mrb[0].mxu0
        %v482 = vpop.f32.mrb[0].mxu0
        %v483 = vadd.f32 %v395, %v482
        %v484 = vpop.f32.mrb[0].mxu0
        %485 = vmatprep.mubr.bf16.mxu0 0
        %486 = vmatmul.mubr.bf16.gmra.mrb[0].mxu0 %v383
        %v487 = vpop.f32.mrb[0].mxu0
        %v488 = vadd.f32 %v395, %v487
        %v489 = vpop.f32.mrb[0].mxu0
        %v490 = vpop.f32.mrb[0].mxu0
        %v491 = vadd.f32 %v395, %v490
        %v492 = vpop.f32.mrb[0].mxu0
        %493 = vmatprep.mubr.bf16.mxu0 0
        %494 = vmatmul.mubr.bf16.gmra.mrb[0].mxu0 %v384
        %v495 = vpop.f32.mrb[0].mxu0
        %v496 = vadd.f32 %v395, %v495
        %v497 = vpop.f32.mrb[0].mxu0
        %v498 = vpop.f32.mrb[0].mxu0
        %v499 = vadd.f32 %v395, %v498
        %v500 = vpop.f32.mrb[0].mxu0
        %501 = vmatprep.mubr.bf16.mxu0 0
        %502 = vmatmul.mubr.bf16.gmra.mrb[0].mxu0 %v385
        %v503 = vpop.f32.mrb[0].mxu0
        %v504 = vadd.f32 %v395, %v503
        %v505 = vpop.f32.mrb[0].mxu0
        %v506 = vpop.f32.mrb[0].mxu0
        %v507 = vadd.f32 %v395, %v506
        %v508 = vpop.f32.mrb[0].mxu0
        %509 = vmatprep.mubr.bf16.mxu0 0
        %510 = vmatmul.mubr.bf16.gmra.mrb[0].mxu0 %v386
        %v511 = vpop.f32.mrb[0].mxu0
        %v512 = vadd.f32 %v395, %v511
        %v513 = vpop.f32.mrb[0].mxu0
        %v514 = vpop.f32.mrb[0].mxu0
        %v515 = vadd.f32 %v395, %v514
        %v516 = vpop.f32.mrb[0].mxu0
        %517 = vmatprep.mubr.bf16.mxu0 0
        %518 = vmatmul.mubr.bf16.gmra.mrb[0].mxu0 %v387
        %v519 = vpop.f32.mrb[0].mxu0
        %v520 = vadd.f32 %v395, %v519
        %v521 = vpop.f32.mrb[0].mxu0
        %v522 = vpop.f32.mrb[0].mxu0
        %v523 = vadd.f32 %v395, %v522
        %v524 = vpop.f32.mrb[0].mxu0
        %525 = vmatprep.mubr.bf16.mxu0 0
        %526 = vmatmul.mubr.bf16.gmra.mrb[0].mxu0 %v388
        %v527 = vpop.f32.mrb[0].mxu0
        %v528 = vadd.f32 %v395, %v527
        %v529 = vpop.f32.mrb[0].mxu0
        %v530 = vpop.f32.mrb[0].mxu0
        %v531 = vadd.f32 %v395, %v530
        %v532 = vpop.f32.mrb[0].mxu0
        %533 = vmatprep.mubr.bf16.mxu0 0
        %534 = vmatmul.mubr.bf16.gmra.mrb[0].mxu0 %v389
        %v535 = vpop.f32.mrb[0].mxu0
        %v536 = vadd.f32 %v395, %v535
        %v537 = vpop.f32.mrb[0].mxu0
        %v538 = vpop.f32.mrb[0].mxu0
        %v539 = vadd.f32 %v395, %v538
        %v540 = vpop.f32.mrb[0].mxu0
        %541 = vdwg.mxu0
        %v542 = vld [vmem:[%s300] sm:$0xff]
        %v543 = vld [vmem:[%s300 + $0x8] sm:$0xff]
        %v544 = vld [vmem:[%s300 + $0x10] sm:$0xff]
        %v545 = vld [vmem:[%s300 + $0x18] sm:$0xff]
        %v546 = vld [vmem:[%s300 + $0x20] sm:$0xff]
        %v547 = vld [vmem:[%s300 + $0x28] sm:$0xff]
        %v548 = vld [vmem:[%s300 + $0x30] sm:$0xff]
        %v549 = vld [vmem:[%s300 + $0x38] sm:$0xff]
        %v550 = vld [vmem:[%s300 + $0x40] sm:$0xff]
        %v551 = vld [vmem:[%s300 + $0x48] sm:$0xff]
        %v552 = vld [vmem:[%s300 + $0x50] sm:$0xff]
        %v553 = vld [vmem:[%s300 + $0x58] sm:$0xff]
        %v554 = vld [vmem:[%s300 + $0x60] sm:$0xff]
        %v555 = vld [vmem:[%s300 + $0x68] sm:$0xff]
        %v556 = vld [vmem:[%s300 + $0x70] sm:$0xff]
        %v557 = vld [vmem:[%s300 + $0x78] sm:$0xff]
        %v558 = vadd.f32 %v480, %v542
        %v559 = vadd.f32 %v483, %v543
        %v560 = vadd.f32 %v488, %v544
        %v561 = vadd.f32 %v491, %v545
        %v562 = vadd.f32 %v496, %v546
        %v563 = vadd.f32 %v499, %v547
        %v564 = vadd.f32 %v504, %v548
        %v565 = vadd.f32 %v507, %v549
        %v566 = vadd.f32 %v512, %v550
        %v567 = vadd.f32 %v515, %v551
        %v568 = vadd.f32 %v520, %v552
        %v569 = vadd.f32 %v523, %v553
        %v570 = vadd.f32 %v528, %v554
        %v571 = vadd.f32 %v531, %v555
        %v572 = vadd.f32 %v536, %v556
        %v573 = vadd.f32 %v539, %v557
        %v574 = vld [vmem:[%s4] sm:$0x1]
        %v575 = vld [vmem:[%s5] sm:$0x1]
        %576 = vadd.xlane.f32.xlu0 %v558
        %v577 = vpop.xlane.xlu0 %576
        %578 = vadd.xlane.f32.xlu0 %v559
        %v579 = vpop.xlane.xlu0 %578
        %580 = vadd.xlane.f32.xlu0 %v560
        %v581 = vpop.xlane.xlu0 %580
        %582 = vadd.xlane.f32.xlu0 %v561
        %v583 = vpop.xlane.xlu0 %582
        %584 = vadd.xlane.f32.xlu0 %v562
        %v585 = vpop.xlane.xlu0 %584
        %586 = vadd.xlane.f32.xlu0 %v563
        %v587 = vpop.xlane.xlu0 %586
        %588 = vadd.xlane.f32.xlu0 %v564
        %v589 = vpop.xlane.xlu0 %588
        %590 = vadd.xlane.f32.xlu0 %v565
        %v591 = vpop.xlane.xlu0 %590
        %592 = vadd.xlane.f32.xlu0 %v566
        %v593 = vpop.xlane.xlu0 %592
        %594 = vadd.xlane.f32.xlu0 %v567
        %v595 = vpop.xlane.xlu0 %594
        %596 = vadd.xlane.f32.xlu0 %v568
        %v597 = vpop.xlane.xlu0 %596
        %598 = vadd.xlane.f32.xlu0 %v569
        %v599 = vpop.xlane.xlu0 %598
        %600 = vadd.xlane.f32.xlu0 %v570
        %v601 = vpop.xlane.xlu0 %600
        %602 = vadd.xlane.f32.xlu0 %v571
        %v603 = vpop.xlane.xlu0 %602
        %604 = vadd.xlane.f32.xlu0 %v572
        %v605 = vpop.xlane.xlu0 %604
        %606 = vadd.xlane.f32.xlu0 %v573
        %v607 = vpop.xlane.xlu0 %606
        %v608 = vrcp.pop 128.0
        %v609 = vmul.f32 %v577, %v608
        %v610 = vmul.f32 %v579, %v608
        %v611 = vmul.f32 %v581, %v608
        %v612 = vmul.f32 %v583, %v608
        %v613 = vmul.f32 %v585, %v608
        %v614 = vmul.f32 %v587, %v608
        %v615 = vmul.f32 %v589, %v608
        %v616 = vmul.f32 %v591, %v608
        %v617 = vmul.f32 %v593, %v608
        %v618 = vmul.f32 %v595, %v608
        %v619 = vmul.f32 %v597, %v608
        %v620 = vmul.f32 %v599, %v608
        %v621 = vmul.f32 %v601, %v608
        %v622 = vmul.f32 %v603, %v608
        %v623 = vmul.f32 %v605, %v608
        %v624 = vmul.f32 %v607, %v608
        %v625 = vsub.f32 %v558, %v609
        %v626 = vsub.f32 %v559, %v610
        %v627 = vsub.f32 %v560, %v611
        %v628 = vsub.f32 %v561, %v612
        %v629 = vsub.f32 %v562, %v613
        %v630 = vsub.f32 %v563, %v614
        %v631 = vsub.f32 %v564, %v615
        %v632 = vsub.f32 %v565, %v616
        %v633 = vsub.f32 %v566, %v617
        %v634 = vsub.f32 %v567, %v618
        %v635 = vsub.f32 %v568, %v619
        %v636 = vsub.f32 %v569, %v620
        %v637 = vsub.f32 %v570, %v621
        %v638 = vsub.f32 %v571, %v622
        %v639 = vsub.f32 %v572, %v623
        %v640 = vsub.f32 %v573, %v624
        %v641 = vmul.f32 %v625, %v625
        %v642 = vmul.f32 %v626, %v626
        %v643 = vmul.f32 %v627, %v627
        %v644 = vmul.f32 %v628, %v628
        %v645 = vmul.f32 %v629, %v629
        %v646 = vmul.f32 %v630, %v630
        %v647 = vmul.f32 %v631, %v631
        %v648 = vmul.f32 %v632, %v632
        %v649 = vmul.f32 %v633, %v633
        %v650 = vmul.f32 %v634, %v634
        %v651 = vmul.f32 %v635, %v635
        %v652 = vmul.f32 %v636, %v636
        %v653 = vmul.f32 %v637, %v637
        %v654 = vmul.f32 %v638, %v638
        %v655 = vmul.f32 %v639, %v639
        %v656 = vmul.f32 %v640, %v640
        %657 = vadd.xlane.f32.xlu0 %v641
        %v658 = vpop.xlane.xlu0 %657
        %659 = vadd.xlane.f32.xlu0 %v642
        %v660 = vpop.xlane.xlu0 %659
        %661 = vadd.xlane.f32.xlu0 %v643
        %v662 = vpop.xlane.xlu0 %661
        %663 = vadd.xlane.f32.xlu0 %v644
        %v664 = vpop.xlane.xlu0 %663
        %665 = vadd.xlane.f32.xlu0 %v645
        %v666 = vpop.xlane.xlu0 %665
        %667 = vadd.xlane.f32.xlu0 %v646
        %v668 = vpop.xlane.xlu0 %667
        %669 = vadd.xlane.f32.xlu0 %v647
        %v670 = vpop.xlane.xlu0 %669
        %671 = vadd.xlane.f32.xlu0 %v648
        %v672 = vpop.xlane.xlu0 %671
        %673 = vadd.xlane.f32.xlu0 %v649
        %v674 = vpop.xlane.xlu0 %673
        %675 = vadd.xlane.f32.xlu0 %v650
        %v676 = vpop.xlane.xlu0 %675
        %677 = vadd.xlane.f32.xlu0 %v651
        %v678 = vpop.xlane.xlu0 %677
        %679 = vadd.xlane.f32.xlu0 %v652
        %v680 = vpop.xlane.xlu0 %679
        %681 = vadd.xlane.f32.xlu0 %v653
        %v682 = vpop.xlane.xlu0 %681
        %683 = vadd.xlane.f32.xlu0 %v654
        %v684 = vpop.xlane.xlu0 %683
        %685 = vadd.xlane.f32.xlu0 %v655
        %v686 = vpop.xlane.xlu0 %685
        %687 = vadd.xlane.f32.xlu0 %v656
        %v688 = vpop.xlane.xlu0 %687
        %v689 = vmul.f32 %v658, %v608
        %v690 = vmul.f32 %v660, %v608
        %v691 = vmul.f32 %v662, %v608
        %v692 = vmul.f32 %v664, %v608
        %v693 = vmul.f32 %v666, %v608
        %v694 = vmul.f32 %v668, %v608
        %v695 = vmul.f32 %v670, %v608
        %v696 = vmul.f32 %v672, %v608
        %v697 = vmul.f32 %v674, %v608
        %v698 = vmul.f32 %v676, %v608
        %v699 = vmul.f32 %v678, %v608
        %v700 = vmul.f32 %v680, %v608
        %v701 = vmul.f32 %v682, %v608
        %v702 = vmul.f32 %v684, %v608
        %v703 = vmul.f32 %v686, %v608
        %v704 = vmul.f32 %v688, %v608
        %v705 = vadd.f32 %v689, 1e-12
        %v706 = vadd.f32 %v690, 1e-12
        %v707 = vadd.f32 %v691, 1e-12
        %v708 = vadd.f32 %v692, 1e-12
        %v709 = vadd.f32 %v693, 1e-12
        %v710 = vadd.f32 %v694, 1e-12
        %v711 = vadd.f32 %v695, 1e-12
        %v712 = vadd.f32 %v696, 1e-12
        %v713 = vadd.f32 %v697, 1e-12
        %v714 = vadd.f32 %v698, 1e-12
        %v715 = vadd.f32 %v699, 1e-12
        %v716 = vadd.f32 %v700, 1e-12
        %v717 = vadd.f32 %v701, 1e-12
        %v718 = vadd.f32 %v702, 1e-12
        %v719 = vadd.f32 %v703, 1e-12
        %v720 = vadd.f32 %v704, 1e-12
        %v721 = vrsqrt.pop %v705
        %v722 = vrsqrt.pop %v706
        %v723 = vrsqrt.pop %v707
        %v724 = vrsqrt.pop %v708
        %v725 = vrsqrt.pop %v709
        %v726 = vrsqrt.pop %v710
        %v727 = vrsqrt.pop %v711
        %v728 = vrsqrt.pop %v712
        %v729 = vrsqrt.pop %v713
        %v730 = vrsqrt.pop %v714
        %v731 = vrsqrt.pop %v715
        %v732 = vrsqrt.pop %v716
        %v733 = vrsqrt.pop %v717
        %v734 = vrsqrt.pop %v718
        %v735 = vrsqrt.pop %v719
        %v736 = vrsqrt.pop %v720
        %v737 = vmul.f32 %v625, %v721
        %v738 = vmul.f32 %v626, %v722
        %v739 = vmul.f32 %v627, %v723
        %v740 = vmul.f32 %v628, %v724
        %v741 = vmul.f32 %v629, %v725
        %v742 = vmul.f32 %v630, %v726
        %v743 = vmul.f32 %v631, %v727
        %v744 = vmul.f32 %v632, %v728
        %v745 = vmul.f32 %v633, %v729
        %v746 = vmul.f32 %v634, %v730
        %v747 = vmul.f32 %v635, %v731
        %v748 = vmul.f32 %v636, %v732
        %v749 = vmul.f32 %v637, %v733
        %v750 = vmul.f32 %v638, %v734
        %v751 = vmul.f32 %v639, %v735
        %v752 = vmul.f32 %v640, %v736
        %v754 = vlaneseq
        %v755 = vshrl.u32 %v754, 7
        %v756 = vsub.s32 0, %v755
        %v757 = vrot.slane %v574, %v756
        %v759 = vmul.f32 %v757, %v737
        %v760 = vmul.f32 %v757, %v738
        %v761 = vmul.f32 %v757, %v739
        %v762 = vmul.f32 %v757, %v740
        %v763 = vmul.f32 %v757, %v741
        %v764 = vmul.f32 %v757, %v742
        %v765 = vmul.f32 %v757, %v743
        %v766 = vmul.f32 %v757, %v744
        %v767 = vmul.f32 %v757, %v745
        %v768 = vmul.f32 %v757, %v746
        %v769 = vmul.f32 %v757, %v747
        %v770 = vmul.f32 %v757, %v748
        %v771 = vmul.f32 %v757, %v749
        %v772 = vmul.f32 %v757, %v750
        %v773 = vmul.f32 %v757, %v751
        %v774 = vmul.f32 %v757, %v752
        %v776 = vlaneseq
        %v777 = vshrl.u32 %v776, 7
        %v778 = vsub.s32 0, %v777
        %v779 = vrot.slane %v575, %v778
        %v781 = vadd.f32 %v759, %v779
        %v782 = vadd.f32 %v760, %v779
        %v783 = vadd.f32 %v761, %v779
        %v784 = vadd.f32 %v762, %v779
        %v785 = vadd.f32 %v763, %v779
        %v786 = vadd.f32 %v764, %v779
        %v787 = vadd.f32 %v765, %v779
        %v788 = vadd.f32 %v766, %v779
        %v789 = vadd.f32 %v767, %v779
        %v790 = vadd.f32 %v768, %v779
        %v791 = vadd.f32 %v769, %v779
        %v792 = vadd.f32 %v770, %v779
        %v793 = vadd.f32 %v771, %v779
        %v794 = vadd.f32 %v772, %v779
        %v795 = vadd.f32 %v773, %v779
        %v796 = vadd.f32 %v774, %v779
        %797 = vst [vmem:[%s333] sm:$0xff] %v781
        %798 = vst [vmem:[%s333 + $0x8] sm:$0xff] %v782
        %799 = vst [vmem:[%s333 + $0x10] sm:$0xff] %v783
        %800 = vst [vmem:[%s333 + $0x18] sm:$0xff] %v784
        %801 = vst [vmem:[%s333 + $0x20] sm:$0xff] %v785
        %802 = vst [vmem:[%s333 + $0x28] sm:$0xff] %v786
        %803 = vst [vmem:[%s333 + $0x30] sm:$0xff] %v787
        %804 = vst [vmem:[%s333 + $0x38] sm:$0xff] %v788
        %805 = vst [vmem:[%s333 + $0x40] sm:$0xff] %v789
        %806 = vst [vmem:[%s333 + $0x48] sm:$0xff] %v790
        %807 = vst [vmem:[%s333 + $0x50] sm:$0xff] %v791
        %808 = vst [vmem:[%s333 + $0x58] sm:$0xff] %v792
        %809 = vst [vmem:[%s333 + $0x60] sm:$0xff] %v793
        %810 = vst [vmem:[%s333 + $0x68] sm:$0xff] %v794
        %811 = vst [vmem:[%s333 + $0x70] sm:$0xff] %v795
        %812 = vst [vmem:[%s333 + $0x78] sm:$0xff] %v796
        %s813 = sand.u32 %s168, 1
        %s814 = scalar_lea.sflag [#allocation4], %s813
        %s815 = sand.u32 %s168, 1
        %s816 = smul.addr %s815, 128
        %s817 = scalar_lea.vmem [#allocation8], %s816
        // Predicated region
        $region57: #{tpu_custom_call.1} parent=43 // pred_check
          %p818 = pneg %p178
        $region58: #{tpu_custom_call.1} parent=43 // pred_check_branch
          %820 = sbr.rel (%p818) target = $region60
        $region59: #{tpu_custom_call.1} parent=43 // pred_region
          %s821 = smul.u32 16, %s24
          %s822 = ssub.s32 50, %s821
          %p823 = scmp.lt.s32.totalorder %s822, 16
          %s824 = scalar_select %p823, %s822, 16
          %s825 = smul.u32 128, %s824
          %s827 = ssub.s32 2048, %s825
          %828 = vsyncadd %s814, %s827
          %p829 = scmp.ne.s32.totalorder 0, %s825
          %s830 = smul.addr %s821, 128
          %s831 = scalar_lea.hbm %s6, %s830
          %s832 = smul.u32 8, %s824
          %s833 = sshll.u32 %s817, 4
          %s834 = int_to_ptr.vmem [resolvable:$true] %s833
          %s835 = sshll.u32 %s832, 4
          %839 = dma.vmem_to_hbm [thread:$0]  (%p829), %s834, %s835, %s831, %s814, 128, 128, 8
        $region60: #{tpu_custom_call.1} parent=43 // pred_fallthru
          _
      $region44: #{tpu_custom_call.1} parent=5 // pred_fallthru
        _
      %p840 = scmp.le.s32.totalorder 2, %s19
      // Predicated region
      $region61: #{tpu_custom_call.1} parent=5 // pred_check
        %p841 = pneg %p840
      $region62: #{tpu_custom_call.1} parent=5 // pred_check_branch
        %843 = sbr.rel (%p841) target = $region64
      $region63: #{tpu_custom_call.1} parent=5 // pred_region
        %s844 = ssub.s32 %s19, 2
        // Predicated region
        $region65: #{tpu_custom_call.1} parent=63 // pred_check
          %p845 = pneg %p184
        $region66: #{tpu_custom_call.1} parent=63 // pred_check_branch
          %847 = sbr.rel (%p845) target = $region68
        $region67: #{tpu_custom_call.1} parent=63 // pred_region
          %s848 = sand.u32 %s169, 1
          %s849 = scalar_lea.sflag [#allocation4], %s848
          %s850 = sand.u32 %s169, 1
          %s851 = smul.addr %s850, 128
          %s852 = scalar_lea.vmem [#allocation8], %s851
          %853 = dma.done %s849, 2048
        $region68: #{tpu_custom_call.1} parent=63 // pred_fallthru
          _
      $region64: #{tpu_custom_call.1} parent=5 // pred_fallthru
        _
    $region6: #{tpu_custom_call.1} parent=1 // loop_footer
      %s23 = sadd.s32 1, %s19
    $region7: #{tpu_custom_call.1} parent=1 // loop_footer_branch
      %18 = sbr.rel target = $region3
    $region8: #{tpu_custom_call.1} parent=1 // loop_exit
      _
    %854 = vsyncpa [#allocation3], 1
    %s855 = scalar_lea.sflag [#allocation3], 1
    %856 = vsyncpa %s855, 1
    %857 = vsyncpa [#allocation6], 1
    %858 = vsyncpa [#allocation4], 1
    %s859 = scalar_lea.sflag [#allocation4], 1
    %860 = vsyncpa %s859, 1

</llo_original>
